<compile_context>
chip_gen: v6e
topology: v6e:2x2x1
jax: 0.10.0
libtpu: 0.0.40
codegen_flags: <defaults>
</compile_context>

<pallas_src>
import functools

import jax
import jax.numpy as jnp
from jax.experimental import pallas as pl
from jax.experimental.pallas import tpu as pltpu


def _round_up(x, m):
    return ((x + m - 1) // m) * m


# ----------------------------------------------------------------------------
# Tiled path: one fused kernel per GCN layer.
#   grid = (row tiles i, K tiles k)
#   per (i, k):  xw_k  = X_k @ W            (bf16 MXU, f32 result -> bf16)
#                acc  += A_ik @ xw_k        (f32 VMEM accumulator)
#   at k == last: bias add (+ relu) in f32, store bf16 (lane-dense, c=128).
# ----------------------------------------------------------------------------
def _gcn_layer_kernel(x_ref, w_ref, adj_ref, b_ref, o_ref, acc_ref, *, apply_relu):
    k = pl.program_id(1)

    @pl.when(k == 0)
    def _():
        acc_ref[...] = jnp.zeros_like(acc_ref)

    xw = jnp.dot(x_ref[...], w_ref[...], preferred_element_type=jnp.float32)
    acc_ref[...] += jnp.dot(
        adj_ref[...], xw.astype(jnp.bfloat16), preferred_element_type=jnp.float32
    )

    @pl.when(k == pl.num_programs(1) - 1)
    def _():
        h = acc_ref[...] + b_ref[...]          # bias add in f32
        if apply_relu:
            h = jnp.maximum(h, 0.0)            # relu in f32 (no bf16 VPU on v5e)
        o_ref[...] = h.astype(o_ref.dtype)


def gcn_layer_tiled(x_bf16, w_bf16, adj_bf16, bias_f32, *, tm, tk, apply_relu,
                    out_dtype=jnp.bfloat16):
    n_p = adj_bf16.shape[0]
    cin = x_bf16.shape[1]
    c = w_bf16.shape[1]
    kernel = functools.partial(_gcn_layer_kernel, apply_relu=apply_relu)
    return pl.pallas_call(
        kernel,
        out_shape=jax.ShapeDtypeStruct((n_p, c), out_dtype),
        grid_spec=pltpu.PrefetchScalarGridSpec(
            num_scalar_prefetch=0,
            grid=(n_p // tm, n_p // tk),
            in_specs=[
                pl.BlockSpec((tk, cin), lambda i, k: (k, 0)),   # X tile (recomputed XW)
                pl.BlockSpec((cin, c), lambda i, k: (0, 0)),    # W (VMEM resident)
                pl.BlockSpec((tm, tk), lambda i, k: (i, k)),    # A_hat tile
                pl.BlockSpec((1, c), lambda i, k: (0, 0)),      # bias (f32)
            ],
            out_specs=pl.BlockSpec((tm, c), lambda i, k: (i, 0)),
            scratch_shapes=[pltpu.VMEM((tm, c), jnp.float32)],
        ),
        compiler_params=pltpu.CompilerParams(
            dimension_semantics=("parallel", "arbitrary"),
            # ~6 MiB at tm=tk=1024, c=128: safe on v5e/v6e (128 MiB) and v7x (64 MiB).
            vmem_limit_bytes=32 * 1024 * 1024,
        ),
    )(x_bf16, w_bf16, adj_bf16, bias_f32)


# ----------------------------------------------------------------------------
# Fast path (small graphs): all three layers in a single pallas_call.
# A_hat, X, weights and biases are VMEM-resident; no intermediate HBM traffic.
# ----------------------------------------------------------------------------
def _gcn3_fused_kernel(adj_ref, x_ref, w1_ref, b1_ref, w2_ref, b2_ref,
                       w3_ref, b3_ref, o_ref):
    adj = adj_ref[...]

    def layer(h_bf16, w_ref, b_ref, relu):
        xw = jnp.dot(h_bf16, w_ref[...], preferred_element_type=jnp.float32)
        agg = jnp.dot(adj, xw.astype(jnp.bfloat16),
                      preferred_element_type=jnp.float32)
        h = agg + b_ref[...]                   # bias in f32
        if relu:
            h = jnp.maximum(h, 0.0)            # relu in f32
        return h.astype(jnp.bfloat16)

    h = layer(x_ref[...], w1_ref, b1_ref, True)
    h = layer(h, w2_ref, b2_ref, True)
    o_ref[...] = layer(h, w3_ref, b3_ref, False)   # layer-3 out emitted as bf16


def gcn3_fused_small(adj_bf16, x_bf16, w1, b1, w2, b2, w3, b3):
    n_p = adj_bf16.shape[0]
    hid_p = w1.shape[1]
    vmem_spec = pl.BlockSpec(memory_space=pltpu.MemorySpace.VMEM)
    return pl.pallas_call(
        _gcn3_fused_kernel,
        out_shape=jax.ShapeDtypeStruct((n_p, hid_p), jnp.bfloat16),
        in_specs=[vmem_spec] * 8,
        out_specs=vmem_spec,
        compiler_params=pltpu.CompilerParams(vmem_limit_bytes=48 * 1024 * 1024),
    )(adj_bf16, x_bf16, w1, b1, w2, b2, w3, b3)


# ----------------------------------------------------------------------------
# Full forward: pad (directly in bf16) -> fused fast path OR 3 tiled layer
# kernels -> tiny (G, C) pool + Linear tail in plain JAX.
# ----------------------------------------------------------------------------
def gcn3_forward(adj_hat, x, params, pool_mat, *, tile_target=1024,
                 fused_max_nodes=1024):
    (w1, b1, w2, b2, w3, b3, wlin, blin) = params
    n, cin = x.shape
    hidden = w1.shape[1]

    lane = 128      # vreg / MXU lane width
    sub_bf16 = 16   # bf16 sublane packing minimum (avoid padding cin to 128)
    cin_p = _round_up(cin, sub_bf16)
    hid_p = _round_up(hidden, lane)
    bf = jnp.bfloat16

    # Pad directly in the target dtype — no f32 n_p^2 detour.
    # (Callers reusing the same graph should hoist the adjacency pad/cast.)
    w1_p = jnp.pad(w1.astype(bf), ((0, cin_p - cin), (0, hid_p - hidden)))
    w2_p = jnp.pad(w2.astype(bf), ((0, hid_p - hidden), (0, hid_p - hidden)))
    w3_p = jnp.pad(w3.astype(bf), ((0, hid_p - hidden), (0, hid_p - hidden)))
    b1_p = jnp.pad(b1, ((0, 0), (0, hid_p - hidden)))
    b2_p = jnp.pad(b2, ((0, 0), (0, hid_p - hidden)))
    b3_p = jnp.pad(b3, ((0, 0), (0, hid_p - hidden)))

    if _round_up(n, lane) <= fused_max_nodes:
        # Fast path: one kernel for the whole stack (adj + X + weights +
        # intermediates stay well within v7x's 64 MiB VMEM up to n_p ~ 1k).
        n_p = _round_up(n, lane)
        adj_bf = jnp.pad(adj_hat.astype(bf), ((0, n_p - n), (0, n_p - n)))
        x_bf = jnp.pad(x.astype(bf), ((0, n_p - n), (0, cin_p - cin)))
        h3 = gcn3_fused_small(adj_bf, x_bf, w1_p, b1_p, w2_p, b2_p, w3_p, b3_p)
    else:
        tile = min(tile_target, _round_up(n, lane))
        n_p = _round_up(n, tile)
        adj_bf = jnp.pad(adj_hat.astype(bf), ((0, n_p - n), (0, n_p - n)))
        x_bf = jnp.pad(x.astype(bf), ((0, n_p - n), (0, cin_p - cin)))
        h = gcn_layer_tiled(x_bf, w1_p, adj_bf, b1_p, tm=tile, tk=tile, apply_relu=True)
        h = gcn_layer_tiled(h, w2_p, adj_bf, b2_p, tm=tile, tk=tile, apply_relu=True)
        h3 = gcn_layer_tiled(h, w3_p, adj_bf, b3_p, tm=tile, tk=tile, apply_relu=False)

    # Tiny (G, C) tail in plain JAX: mean pool + final Linear, f32.
    # (Padded node rows contain relu(bias) != 0 — sliced off here; they must be
    #  explicitly masked if pooling is ever fused into the kernel.)
    h3 = h3[:n, :hidden].astype(jnp.float32)
    return (pool_mat @ h3) @ wlin + blin


# ----------------------------------------------------------------------------
# Glue (plain JAX): GCN normalization, pooling matrix, params, references.
# ----------------------------------------------------------------------------
def gcn_norm_adj(edge_index, num_nodes):
    """Â = D^{-1/2} (A + I) D^{-1/2}, messages flow source -> target."""
    src, dst = edge_index[0], edge_index[1]
    a = jnp.zeros((num_nodes, num_nodes), jnp.float32).at[dst, src].add(1.0)
    a = a + jnp.eye(num_nodes, dtype=jnp.float32)
    deg = a.sum(axis=1)
    dinv = jnp.where(deg > 0, 1.0 / jnp.sqrt(deg), 0.0)
    return dinv[:, None] * a * dinv[None, :]


def mean_pool_matrix(batch, num_graphs):
    onehot = (batch[None, :] == jnp.arange(num_graphs)[:, None]).astype(jnp.float32)
    counts = jnp.maximum(onehot.sum(axis=1, keepdims=True), 1.0)
    return onehot / counts


def init_params(key, in_channels, hidden_channels, out_channels):
    ks = jax.random.split(key, 4)

    def glorot(k, fan_in, fan_out):
        lim = jnp.sqrt(6.0 / (fan_in + fan_out))
        return jax.random.uniform(k, (fan_in, fan_out), jnp.float32, -lim, lim)

    w1 = glorot(ks[0], in_channels, hidden_channels)
    w2 = glorot(ks[1], hidden_channels, hidden_channels)
    w3 = glorot(ks[2], hidden_channels, hidden_channels)
    wlin = glorot(ks[3], hidden_channels, out_channels)
    b1 = jnp.zeros((1, hidden_channels), jnp.float32)
    b2 = jnp.zeros((1, hidden_channels), jnp.float32)
    b3 = jnp.zeros((1, hidden_channels), jnp.float32)
    blin = jnp.full((1, out_channels), 0.01, jnp.float32)
    return (w1, b1, w2, b2, w3, b3, wlin, blin)


def reference_forward_f32(adj_hat, x, params, pool_mat):
    (w1, b1, w2, b2, w3, b3, wlin, blin) = params
    h = jnp.maximum(adj_hat @ (x @ w1) + b1, 0.0)
    h = jnp.maximum(adj_hat @ (h @ w2) + b2, 0.0)
    h = adj_hat @ (h @ w3) + b3
    return pool_mat @ h @ wlin + blin


def reference_forward_bf16(adj_hat, x, params, pool_mat):
    """Mirrors the kernel arithmetic: bf16 MXU operands, f32 accumulate/bias/relu."""
    (w1, b1, w2, b2, w3, b3, wlin, blin) = params
    bf = lambda a: a.astype(jnp.bfloat16)

    def dot(a, b):
        return jnp.dot(bf(a), bf(b), preferred_element_type=jnp.float32)

    xw = dot(x, w1).astype(jnp.bfloat16)
    h = jnp.maximum(dot(adj_hat, xw) + b1, 0.0).astype(jnp.bfloat16)
    xw = dot(h, w2).astype(jnp.bfloat16)
    h = jnp.maximum(dot(adj_hat, xw) + b2, 0.0).astype(jnp.bfloat16)
    xw = dot(h, w3).astype(jnp.bfloat16)
    h3 = (dot(adj_hat, xw) + b3).astype(jnp.bfloat16)
    return (pool_mat @ h3.astype(jnp.float32)) @ wlin + blin


if __name__ == "__main__":
    key = jax.random.PRNGKey(0)
    in_channels, hidden_channels, out_channels = 8, 32, 4
    fwd = jax.jit(gcn3_forward, static_argnames=("tile_target", "fused_max_nodes"))

    k_x1, k_e1, k_p, k_x2, k_e2 = jax.random.split(key, 5)
    params = init_params(k_p, in_channels, hidden_channels, out_channels)

    # ---- small graph: exercises the fused single-kernel fast path ----
    N1, E1, G1 = 16, 40, 2
    x1 = jax.random.normal(k_x1, (N1, in_channels), jnp.float32)
    ei1 = jax.random.randint(k_e1, (2, E1), 0, N1, jnp.int32)
    batch1 = jnp.concatenate([jnp.zeros(N1 // 2, jnp.int32),
                              jnp.ones(N1 - N1 // 2, jnp.int32)])
    adj1 = gcn_norm_adj(ei1, N1)
    pool1 = mean_pool_matrix(batch1, G1)

    out1 = jax.block_until_ready(fwd(adj1, x1, params, pool1))
    assert out1.shape == (G1, out_channels)
    ref1_bf = reference_forward_bf16(adj1, x1, params, pool1)
    assert jnp.allclose(out1, ref1_bf, atol=2e-3, rtol=2e-3), (out1, ref1_bf)
    ref1_f32 = reference_forward_f32(adj1, x1, params, pool1)
    assert jnp.allclose(out1, ref1_f32, atol=1e-1, rtol=1e-1), (out1, ref1_f32)

    # ---- larger graph: exercises the tiled fused-layer path (grid 3x3) ----
    N2, E2, G2 = 320, 960, 2
    x2 = jax.random.normal(k_x2, (N2, in_channels), jnp.float32)
    ei2 = jax.random.randint(k_e2, (2, E2), 0, N2, jnp.int32)
    batch2 = jnp.concatenate([jnp.zeros(N2 // 2, jnp.int32),
                              jnp.ones(N2 - N2 // 2, jnp.int32)])
    adj2 = gcn_norm_adj(ei2, N2)
    pool2 = mean_pool_matrix(batch2, G2)

    out2 = jax.block_until_ready(
        fwd(adj2, x2, params, pool2, tile_target=128, fused_max_nodes=0))
    assert out2.shape == (G2, out_channels)
    ref2_bf = reference_forward_bf16(adj2, x2, params, pool2)
    assert jnp.allclose(out2, ref2_bf, atol=5e-3, rtol=5e-3), (out2, ref2_bf)
    ref2_f32 = reference_forward_f32(adj2, x2, params, pool2)
    assert jnp.allclose(out2, ref2_f32, atol=1e-1, rtol=1e-1), (out2, ref2_f32)

    print("KERNEL_OK")
</pallas_src>

<mosaic_0001>
module attributes {stable_mosaic.version = 11 : i64} {
  func.func @_gcn3_fused_kernel(%arg0: memref<128x128xbf16, #tpu.memory_space<vmem>>, %arg1: memref<128x16xbf16, #tpu.memory_space<vmem>>, %arg2: memref<16x128xbf16, #tpu.memory_space<vmem>>, %arg3: memref<1x128xf32, #tpu.memory_space<vmem>>, %arg4: memref<128x128xbf16, #tpu.memory_space<vmem>>, %arg5: memref<1x128xf32, #tpu.memory_space<vmem>>, %arg6: memref<128x128xbf16, #tpu.memory_space<vmem>>, %arg7: memref<1x128xf32, #tpu.memory_space<vmem>>, %arg8: memref<128x128xbf16, #tpu.memory_space<vmem>>) attributes {dimension_semantics = [], scalar_prefetch = 0 : i64, scratch_operands = 0 : i64, tpu.core_type = #tpu.core_type<tc>} {
    %c0 = arith.constant 0 : index
    %c0_0 = arith.constant 0 : index
    %0 = vector.load %arg0[%c0, %c0_0] : memref<128x128xbf16, #tpu.memory_space<vmem>>, vector<128x128xbf16>
    %c0_1 = arith.constant 0 : index
    %c0_2 = arith.constant 0 : index
    %1 = vector.load %arg1[%c0_1, %c0_2] : memref<128x16xbf16, #tpu.memory_space<vmem>>, vector<128x16xbf16>
    %c0_3 = arith.constant 0 : index
    %c0_4 = arith.constant 0 : index
    %2 = vector.load %arg2[%c0_3, %c0_4] : memref<16x128xbf16, #tpu.memory_space<vmem>>, vector<16x128xbf16>
    %cst = arith.constant dense<0.000000e+00> : vector<128x128xf32>
    %3 = tpu.matmul %1, %2, %cst {dimension_numbers = #tpu.dot_dimension_numbers<[1], [0], [0], [1], [0, 0, 1, 1], [], []>} : vector<128x16xbf16>, vector<16x128xbf16>, vector<128x128xf32> -> vector<128x128xf32>
    %4 = arith.truncf %3 : vector<128x128xf32> to vector<128x128xbf16>
    %cst_5 = arith.constant dense<0.000000e+00> : vector<128x128xf32>
    %5 = tpu.matmul %0, %4, %cst_5 {dimension_numbers = #tpu.dot_dimension_numbers<[1], [0], [0], [1], [0, 0, 1, 1], [], []>} : vector<128x128xbf16>, vector<128x128xbf16>, vector<128x128xf32> -> vector<128x128xf32>
    %c0_6 = arith.constant 0 : index
    %c0_7 = arith.constant 0 : index
    %6 = vector.load %arg3[%c0_6, %c0_7] : memref<1x128xf32, #tpu.memory_space<vmem>>, vector<1x128xf32>
    %7 = vector.broadcast %6 : vector<1x128xf32> to vector<128x128xf32>
    %8 = arith.addf %5, %7 : vector<128x128xf32>
    %cst_8 = arith.constant 0.000000e+00 : f32
    %9 = vector.broadcast %cst_8 : f32 to vector<128x128xf32>
    %10 = arith.maximumf %8, %9 : vector<128x128xf32>
    %11 = arith.truncf %10 : vector<128x128xf32> to vector<128x128xbf16>
    %c0_9 = arith.constant 0 : index
    %c0_10 = arith.constant 0 : index
    %12 = vector.load %arg4[%c0_9, %c0_10] : memref<128x128xbf16, #tpu.memory_space<vmem>>, vector<128x128xbf16>
    %cst_11 = arith.constant dense<0.000000e+00> : vector<128x128xf32>
    %13 = tpu.matmul %11, %12, %cst_11 {dimension_numbers = #tpu.dot_dimension_numbers<[1], [0], [0], [1], [0, 0, 1, 1], [], []>} : vector<128x128xbf16>, vector<128x128xbf16>, vector<128x128xf32> -> vector<128x128xf32>
    %14 = arith.truncf %13 : vector<128x128xf32> to vector<128x128xbf16>
    %cst_12 = arith.constant dense<0.000000e+00> : vector<128x128xf32>
    %15 = tpu.matmul %0, %14, %cst_12 {dimension_numbers = #tpu.dot_dimension_numbers<[1], [0], [0], [1], [0, 0, 1, 1], [], []>} : vector<128x128xbf16>, vector<128x128xbf16>, vector<128x128xf32> -> vector<128x128xf32>
    %c0_13 = arith.constant 0 : index
    %c0_14 = arith.constant 0 : index
    %16 = vector.load %arg5[%c0_13, %c0_14] : memref<1x128xf32, #tpu.memory_space<vmem>>, vector<1x128xf32>
    %17 = vector.broadcast %16 : vector<1x128xf32> to vector<128x128xf32>
    %18 = arith.addf %15, %17 : vector<128x128xf32>
    %cst_15 = arith.constant 0.000000e+00 : f32
    %19 = vector.broadcast %cst_15 : f32 to vector<128x128xf32>
    %20 = arith.maximumf %18, %19 : vector<128x128xf32>
    %21 = arith.truncf %20 : vector<128x128xf32> to vector<128x128xbf16>
    %c0_16 = arith.constant 0 : index
    %c0_17 = arith.constant 0 : index
    %22 = vector.load %arg6[%c0_16, %c0_17] : memref<128x128xbf16, #tpu.memory_space<vmem>>, vector<128x128xbf16>
    %cst_18 = arith.constant dense<0.000000e+00> : vector<128x128xf32>
    %23 = tpu.matmul %21, %22, %cst_18 {dimension_numbers = #tpu.dot_dimension_numbers<[1], [0], [0], [1], [0, 0, 1, 1], [], []>} : vector<128x128xbf16>, vector<128x128xbf16>, vector<128x128xf32> -> vector<128x128xf32>
    %24 = arith.truncf %23 : vector<128x128xf32> to vector<128x128xbf16>
    %cst_19 = arith.constant dense<0.000000e+00> : vector<128x128xf32>
    %25 = tpu.matmul %0, %24, %cst_19 {dimension_numbers = #tpu.dot_dimension_numbers<[1], [0], [0], [1], [0, 0, 1, 1], [], []>} : vector<128x128xbf16>, vector<128x128xbf16>, vector<128x128xf32> -> vector<128x128xf32>
    %c0_20 = arith.constant 0 : index
    %c0_21 = arith.constant 0 : index
    %26 = vector.load %arg7[%c0_20, %c0_21] : memref<1x128xf32, #tpu.memory_space<vmem>>, vector<1x128xf32>
    %27 = vector.broadcast %26 : vector<1x128xf32> to vector<128x128xf32>
    %28 = arith.addf %25, %27 : vector<128x128xf32>
    %29 = arith.truncf %28 : vector<128x128xf32> to vector<128x128xbf16>
    %c0_22 = arith.constant 0 : index
    %c0_23 = arith.constant 0 : index
    %30 = vector.load %arg8[%c0_22, %c0_23] : memref<128x128xbf16, #tpu.memory_space<vmem>>, vector<128x128xbf16>
    tpu.vector_store %arg8[%c0_22, %c0_23], %29 {strides = array<i32>} : memref<128x128xbf16, #tpu.memory_space<vmem>>, vector<128x128xbf16>,
    return
  }
}

</mosaic_0001>

<llo_original>
// kernel: gcn3_forward.1
$region0: #{gcn3_forward.1}
  #allocation0 [shape = 'u32[]', space=smem, size = 0x4, offset = 0x4, fixed_abs, tag = 'smem constant byte address 0x4 - core index']
  #allocation1 [shape = 'u32[144,128]{1,0:T(1,128)}', space=vmem, size = 0x12000, scoped, tag = 'internal scratch']
  %s0 = inlined_call_operand.vmem [shape: bf16[128,128], index: 0, kind: input, shape index: {}]
  %s1 = inlined_call_operand.vmem [shape: bf16[128,16], index: 1, kind: input, shape index: {}]
  %s2 = inlined_call_operand.vmem [shape: bf16[16,128], index: 2, kind: input, shape index: {}]
  %s3 = inlined_call_operand.vmem [shape: f32[1,128], index: 3, kind: input, shape index: {}]
  %s4 = inlined_call_operand.vmem [shape: bf16[128,128], index: 4, kind: input, shape index: {}]
  %s5 = inlined_call_operand.vmem [shape: f32[1,128], index: 5, kind: input, shape index: {}]
  %s6 = inlined_call_operand.vmem [shape: bf16[128,128], index: 6, kind: input, shape index: {}]
  %s7 = inlined_call_operand.vmem [shape: f32[1,128], index: 7, kind: input, shape index: {}]
  %s8 = inlined_call_operand.vmem [shape: bf16[128,128], index: 8, kind: output, shape index: {}]
  %s9 = sld [smem:[#allocation0]]
  $region42: #{gcn3_forward.1} parent=0
    _
  %s11 = ssub.s32 1, %s9
  %s12 = scalar_select 0, %s11, %s9
  // Predicated region
  $region2: #{gcn3_forward.1} parent=0 // pred_check
    _
  $region3: #{gcn3_forward.1} parent=0 // pred_check_branch
    %14 = sbr.rel (0) target = $region5
  $region4: #{gcn3_forward.1} parent=0 // pred_region
    _
  $region5: #{gcn3_forward.1} parent=0 // pred_fallthru
    _
  // Predicated region
  $region6: #{gcn3_forward.1} parent=0 // pred_check
    _
  $region7: #{gcn3_forward.1} parent=0 // pred_check_branch
    %16 = sbr.rel (0) target = $region9
  $region8: #{gcn3_forward.1} parent=0 // pred_region
    _
  $region9: #{gcn3_forward.1} parent=0 // pred_fallthru
    _
  // Predicated region
  $region10: #{gcn3_forward.1} parent=0 // pred_check
    _
  $region11: #{gcn3_forward.1} parent=0 // pred_check_branch
    %18 = sbr.rel (0) target = $region13
  $region12: #{gcn3_forward.1} parent=0 // pred_region
    _
  $region13: #{gcn3_forward.1} parent=0 // pred_fallthru
    _
  // Predicated region
  $region14: #{gcn3_forward.1} parent=0 // pred_check
    _
  $region15: #{gcn3_forward.1} parent=0 // pred_check_branch
    %20 = sbr.rel (0) target = $region17
  $region16: #{gcn3_forward.1} parent=0 // pred_region
    _
  $region17: #{gcn3_forward.1} parent=0 // pred_fallthru
    _
  // Predicated region
  $region18: #{gcn3_forward.1} parent=0 // pred_check
    _
  $region19: #{gcn3_forward.1} parent=0 // pred_check_branch
    %22 = sbr.rel (0) target = $region21
  $region20: #{gcn3_forward.1} parent=0 // pred_region
    _
  $region21: #{gcn3_forward.1} parent=0 // pred_fallthru
    _
  // Predicated region
  $region22: #{gcn3_forward.1} parent=0 // pred_check
    _
  $region23: #{gcn3_forward.1} parent=0 // pred_check_branch
    %24 = sbr.rel (0) target = $region25
  $region24: #{gcn3_forward.1} parent=0 // pred_region
    _
  $region25: #{gcn3_forward.1} parent=0 // pred_fallthru
    _
  // Predicated region
  $region26: #{gcn3_forward.1} parent=0 // pred_check
    _
  $region27: #{gcn3_forward.1} parent=0 // pred_check_branch
    %26 = sbr.rel (0) target = $region29
  $region28: #{gcn3_forward.1} parent=0 // pred_region
    _
  $region29: #{gcn3_forward.1} parent=0 // pred_fallthru
    _
  // Predicated region
  $region30: #{gcn3_forward.1} parent=0 // pred_check
    _
  $region31: #{gcn3_forward.1} parent=0 // pred_check_branch
    %28 = sbr.rel (0) target = $region33
  $region32: #{gcn3_forward.1} parent=0 // pred_region
    _
  $region33: #{gcn3_forward.1} parent=0 // pred_fallthru
    _
  %v30 = vld [vmem:[%s0] sm:$0xf]
  %v31 = vld [vmem:[%s0 + $0x4] sm:$0xf]
  %v32 = vld [vmem:[%s0 + $0x8] sm:$0xf]
  %v33 = vld [vmem:[%s0 + $0xc] sm:$0xf]
  %v34 = vld [vmem:[%s0 + $0x10] sm:$0xf]
  %v35 = vld [vmem:[%s0 + $0x14] sm:$0xf]
  %v36 = vld [vmem:[%s0 + $0x18] sm:$0xf]
  %v37 = vld [vmem:[%s0 + $0x1c] sm:$0xf]
  %v38 = vld [vmem:[%s0 + $0x20] sm:$0xf]
  %v39 = vld [vmem:[%s0 + $0x24] sm:$0xf]
  %v40 = vld [vmem:[%s0 + $0x28] sm:$0xf]
  %v41 = vld [vmem:[%s0 + $0x2c] sm:$0xf]
  %v42 = vld [vmem:[%s0 + $0x30] sm:$0xf]
  %v43 = vld [vmem:[%s0 + $0x34] sm:$0xf]
  %v44 = vld [vmem:[%s0 + $0x38] sm:$0xf]
  %v45 = vld [vmem:[%s0 + $0x3c] sm:$0xf]
  %v46 = vld [vmem:[%s1] sm:$0xf]
  %v47 = vld [vmem:[%s1 + $0x4] sm:$0xf]
  %v48 = vld [vmem:[%s1 + $0x8] sm:$0xf]
  %v49 = vld [vmem:[%s1 + $0xc] sm:$0xf]
  %v50 = vld [vmem:[%s1 + $0x10] sm:$0xf]
  %v51 = vld [vmem:[%s1 + $0x14] sm:$0xf]
  %v52 = vld [vmem:[%s1 + $0x18] sm:$0xf]
  %v53 = vld [vmem:[%s1 + $0x1c] sm:$0xf]
  %v54 = vld [vmem:[%s1 + $0x20] sm:$0xf]
  %v55 = vld [vmem:[%s1 + $0x24] sm:$0xf]
  %v56 = vld [vmem:[%s1 + $0x28] sm:$0xf]
  %v57 = vld [vmem:[%s1 + $0x2c] sm:$0xf]
  %v58 = vld [vmem:[%s1 + $0x30] sm:$0xf]
  %v59 = vld [vmem:[%s1 + $0x34] sm:$0xf]
  %v60 = vld [vmem:[%s1 + $0x38] sm:$0xf]
  %v61 = vld [vmem:[%s1 + $0x3c] sm:$0xf]
  %v62 = vld [vmem:[%s2] sm:$0xf]
  %v63 = vld [vmem:[%s2 + $0x4] sm:$0xf]
  %v80 = vunpack.c.l.b16 %v46
  %v81 = vunpack.c.l.b16 %v47
  %v82 = vunpack.c.l.b16 %v48
  %v83 = vunpack.c.l.b16 %v49
  %v84 = vunpack.c.l.b16 %v50
  %v85 = vunpack.c.l.b16 %v51
  %v86 = vunpack.c.l.b16 %v52
  %v87 = vunpack.c.l.b16 %v53
  %v88 = vunpack.c.l.b16 %v54
  %v89 = vunpack.c.l.b16 %v55
  %v90 = vunpack.c.l.b16 %v56
  %v91 = vunpack.c.l.b16 %v57
  %v92 = vunpack.c.l.b16 %v58
  %v93 = vunpack.c.l.b16 %v59
  %v94 = vunpack.c.l.b16 %v60
  %v95 = vunpack.c.l.b16 %v61
  %v96 = vpack.c.b16 %v81, %v80
  %v97 = vpack.c.b16 %v83, %v82
  %v98 = vpack.c.b16 %v85, %v84
  %v99 = vpack.c.b16 %v87, %v86
  %v100 = vpack.c.b16 %v89, %v88
  %v101 = vpack.c.b16 %v91, %v90
  %v102 = vpack.c.b16 %v93, %v92
  %v103 = vpack.c.b16 %v95, %v94
  %v106 = vunpack.c.l.b16 %v62
  %v107 = vunpack.c.l.b16 %v63
  %v108 = vpack.c.b16 %v107, %v106
  %vm110 = vcmask 130048
  %v112 = vsel %vm110, %v96, 0
  %v115 = vsel %vm110, %v97, 0
  %v118 = vsel %vm110, %v98, 0
  %v121 = vsel %vm110, %v99, 0
  %v124 = vsel %vm110, %v100, 0
  %v127 = vsel %vm110, %v101, 0
  %v130 = vsel %vm110, %v102, 0
  %v133 = vsel %vm110, %v103, 0
  %135 = vmatprep.subr.bf16.mxu0 0
  %136 = vmatpush1.bf16.msra.mxu0 0
  %137 = vmatprep.subr.bf16.mxu0 0
  %138 = vmatpush1.bf16.msra.mxu0 0
  %139 = vmatprep.subr.bf16.mxu0 0
  %140 = vmatpush1.bf16.msra.mxu0 0
  %141 = vmatprep.subr.bf16.mxu0 0
  %142 = vmatpush1.bf16.msra.mxu0 0
  %143 = vmatprep.subr.bf16.mxu0 0
  %144 = vmatpush1.bf16.msra.mxu0 0
  %145 = vmatprep.subr.bf16.mxu0 0
  %146 = vmatpush1.bf16.msra.mxu0 0
  %147 = vmatprep.subr.bf16.mxu0 0
  %148 = vmatpush1.bf16.msra.mxu0 0
  %149 = vmatprep.subr.bf16.mxu0 0
  %150 = vmatpush1.bf16.msra.mxu0 %v108
  %151 = vmatprep.subr.bf16.mxu0 0
  %152 = vmatpush2.bf16.msra.mxu0 0
  %153 = vmatprep.subr.bf16.mxu0 0
  %154 = vmatpush2.bf16.msra.mxu0 0
  %155 = vmatprep.subr.bf16.mxu0 0
  %156 = vmatpush2.bf16.msra.mxu0 0
  %157 = vmatprep.subr.bf16.mxu0 0
  %158 = vmatpush2.bf16.msra.mxu0 0
  %159 = vmatprep.subr.bf16.mxu0 0
  %160 = vmatpush2.bf16.msra.mxu0 0
  %161 = vmatprep.subr.bf16.mxu0 0
  %162 = vmatpush2.bf16.msra.mxu0 0
  %163 = vmatprep.subr.bf16.mxu0 0
  %164 = vmatpush2.bf16.msra.mxu0 0
  %165 = vmatprep.subr.bf16.mxu0 0
  %166 = vmatpush2.bf16.msra.mxu0 0
  %167 = vmatprep.mubr.bf16.mxu0 0
  %168 = vmatmul.mubr.bf16.gmra.mxu0 %v112
  %v169 = vpop.f32.mrf.mxu0
  %v170 = vadd.f32 0.0, %v169
  %v171 = vpop.f32.mrf.mxu0
  %v172 = vpop.f32.mrf.mxu0
  %v173 = vadd.f32 0.0, %v172
  %v174 = vpop.f32.mrf.mxu0
  %175 = vmatprep.mubr.bf16.mxu0 0
  %176 = vmatmul.mubr.bf16.gmra.mxu0 %v115
  %v177 = vpop.f32.mrf.mxu0
  %v178 = vadd.f32 0.0, %v177
  %v179 = vpop.f32.mrf.mxu0
  %v180 = vpop.f32.mrf.mxu0
  %v181 = vadd.f32 0.0, %v180
  %v182 = vpop.f32.mrf.mxu0
  %183 = vmatprep.mubr.bf16.mxu0 0
  %184 = vmatmul.mubr.bf16.gmra.mxu0 %v118
  %v185 = vpop.f32.mrf.mxu0
  %v186 = vadd.f32 0.0, %v185
  %v187 = vpop.f32.mrf.mxu0
  %v188 = vpop.f32.mrf.mxu0
  %v189 = vadd.f32 0.0, %v188
  %v190 = vpop.f32.mrf.mxu0
  %191 = vmatprep.mubr.bf16.mxu0 0
  %192 = vmatmul.mubr.bf16.gmra.mxu0 %v121
  %v193 = vpop.f32.mrf.mxu0
  %v194 = vadd.f32 0.0, %v193
  %v195 = vpop.f32.mrf.mxu0
  %v196 = vpop.f32.mrf.mxu0
  %v197 = vadd.f32 0.0, %v196
  %v198 = vpop.f32.mrf.mxu0
  %199 = vmatprep.mubr.bf16.mxu0 0
  %200 = vmatmul.mubr.bf16.gmra.mxu0 %v124
  %v201 = vpop.f32.mrf.mxu0
  %v202 = vadd.f32 0.0, %v201
  %v203 = vpop.f32.mrf.mxu0
  %v204 = vpop.f32.mrf.mxu0
  %v205 = vadd.f32 0.0, %v204
  %v206 = vpop.f32.mrf.mxu0
  %207 = vmatprep.mubr.bf16.mxu0 0
  %208 = vmatmul.mubr.bf16.gmra.mxu0 %v127
  %v209 = vpop.f32.mrf.mxu0
  %v210 = vadd.f32 0.0, %v209
  %v211 = vpop.f32.mrf.mxu0
  %v212 = vpop.f32.mrf.mxu0
  %v213 = vadd.f32 0.0, %v212
  %v214 = vpop.f32.mrf.mxu0
  %215 = vmatprep.mubr.bf16.mxu0 0
  %216 = vmatmul.mubr.bf16.gmra.mxu0 %v130
  %v217 = vpop.f32.mrf.mxu0
  %v218 = vadd.f32 0.0, %v217
  %v219 = vpop.f32.mrf.mxu0
  %v220 = vpop.f32.mrf.mxu0
  %v221 = vadd.f32 0.0, %v220
  %v222 = vpop.f32.mrf.mxu0
  %223 = vmatprep.mubr.bf16.mxu0 0
  %224 = vmatmul.mubr.bf16.gmra.mxu0 %v133
  %v225 = vpop.f32.mrf.mxu0
  %v226 = vadd.f32 0.0, %v225
  %v227 = vpop.f32.mrf.mxu0
  %v228 = vpop.f32.mrf.mxu0
  %v229 = vadd.f32 0.0, %v228
  %v230 = vpop.f32.mrf.mxu0
  %231 = vdwg.mxu0
  %v232 = vpack.c.bf16 %v173, %v170
  %v233 = vpack.c.bf16 %v181, %v178
  %v234 = vpack.c.bf16 %v189, %v186
  %v235 = vpack.c.bf16 %v197, %v194
  %v236 = vpack.c.bf16 %v205, %v202
  %v237 = vpack.c.bf16 %v213, %v210
  %v238 = vpack.c.bf16 %v221, %v218
  %v239 = vpack.c.bf16 %v229, %v226
  %v240 = vld [vmem:[%s3] sm:$0x1]
  %v242 = vlaneseq
  %v243 = vshrl.u32 %v242, 7
  %v244 = vsub.s32 0, %v243
  %v245 = vrot.slane %v240, %v244
  %v263 = vunpack.c.l.b16 %v30
  %v264 = vunpack.c.l.b16 %v31
  %v265 = vunpack.c.l.b16 %v32
  %v266 = vunpack.c.l.b16 %v33
  %v267 = vunpack.c.l.b16 %v34
  %v268 = vunpack.c.l.b16 %v35
  %v269 = vunpack.c.l.b16 %v36
  %v270 = vunpack.c.l.b16 %v37
  %v271 = vunpack.c.l.b16 %v38
  %v272 = vunpack.c.l.b16 %v39
  %v273 = vunpack.c.l.b16 %v40
  %v274 = vunpack.c.l.b16 %v41
  %v275 = vunpack.c.l.b16 %v42
  %v276 = vunpack.c.l.b16 %v43
  %v277 = vunpack.c.l.b16 %v44
  %v278 = vunpack.c.l.b16 %v45
  %v279 = vpack.c.b16 %v264, %v263
  %v280 = vpack.c.b16 %v266, %v265
  %v281 = vpack.c.b16 %v268, %v267
  %v282 = vpack.c.b16 %v270, %v269
  %v283 = vpack.c.b16 %v272, %v271
  %v284 = vpack.c.b16 %v274, %v273
  %v285 = vpack.c.b16 %v276, %v275
  %v286 = vpack.c.b16 %v278, %v277
  %295 = vmatprep.subr.bf16.mxu0 0
  %296 = vmatpush1.bf16.msra.mxu0 %v239
  %297 = vmatprep.subr.bf16.mxu0 0
  %298 = vmatpush1.bf16.msra.mxu0 %v238
  %299 = vmatprep.subr.bf16.mxu0 0
  %300 = vmatpush1.bf16.msra.mxu0 %v237
  %301 = vmatprep.subr.bf16.mxu0 0
  %302 = vmatpush1.bf16.msra.mxu0 %v236
  %303 = vmatprep.subr.bf16.mxu0 0
  %304 = vmatpush1.bf16.msra.mxu0 %v235
  %305 = vmatprep.subr.bf16.mxu0 0
  %306 = vmatpush1.bf16.msra.mxu0 %v234
  %307 = vmatprep.subr.bf16.mxu0 0
  %308 = vmatpush1.bf16.msra.mxu0 %v233
  %309 = vmatprep.subr.bf16.mxu0 0
  %310 = vmatpush1.bf16.msra.mxu0 %v232
  %311 = vmatprep.subr.bf16.mxu0 0
  %312 = vmatpush2.bf16.msra.mxu0 0
  %313 = vmatprep.subr.bf16.mxu0 0
  %314 = vmatpush2.bf16.msra.mxu0 0
  %315 = vmatprep.subr.bf16.mxu0 0
  %316 = vmatpush2.bf16.msra.mxu0 0
  %317 = vmatprep.subr.bf16.mxu0 0
  %318 = vmatpush2.bf16.msra.mxu0 0
  %319 = vmatprep.subr.bf16.mxu0 0
  %320 = vmatpush2.bf16.msra.mxu0 0
  %321 = vmatprep.subr.bf16.mxu0 0
  %322 = vmatpush2.bf16.msra.mxu0 0
  %323 = vmatprep.subr.bf16.mxu0 0
  %324 = vmatpush2.bf16.msra.mxu0 0
  %325 = vmatprep.subr.bf16.mxu0 0
  %326 = vmatpush2.bf16.msra.mxu0 0
  %327 = vmatprep.mubr.bf16.mxu0 0
  %328 = vmatmul.mubr.bf16.gmra.mxu0 %v279
  %v329 = vpop.f32.mrf.mxu0
  %v330 = vadd.f32 %v245, %v329
  %v331 = vpop.f32.mrf.mxu0
  %v332 = vpop.f32.mrf.mxu0
  %v333 = vadd.f32 %v245, %v332
  %v334 = vpop.f32.mrf.mxu0
  %335 = vmatprep.mubr.bf16.mxu0 0
  %336 = vmatmul.mubr.bf16.gmra.mxu0 %v280
  %v337 = vpop.f32.mrf.mxu0
  %v338 = vadd.f32 %v245, %v337
  %v339 = vpop.f32.mrf.mxu0
  %v340 = vpop.f32.mrf.mxu0
  %v341 = vadd.f32 %v245, %v340
  %v342 = vpop.f32.mrf.mxu0
  %343 = vmatprep.mubr.bf16.mxu0 0
  %344 = vmatmul.mubr.bf16.gmra.mxu0 %v281
  %v345 = vpop.f32.mrf.mxu0
  %v346 = vadd.f32 %v245, %v345
  %v347 = vpop.f32.mrf.mxu0
  %v348 = vpop.f32.mrf.mxu0
  %v349 = vadd.f32 %v245, %v348
  %v350 = vpop.f32.mrf.mxu0
  %351 = vmatprep.mubr.bf16.mxu0 0
  %352 = vmatmul.mubr.bf16.gmra.mxu0 %v282
  %v353 = vpop.f32.mrf.mxu0
  %v354 = vadd.f32 %v245, %v353
  %v355 = vpop.f32.mrf.mxu0
  %v356 = vpop.f32.mrf.mxu0
  %v357 = vadd.f32 %v245, %v356
  %v358 = vpop.f32.mrf.mxu0
  %359 = vmatprep.mubr.bf16.mxu0 0
  %360 = vmatmul.mubr.bf16.gmra.mxu0 %v283
  %v361 = vpop.f32.mrf.mxu0
  %v362 = vadd.f32 %v245, %v361
  %v363 = vpop.f32.mrf.mxu0
  %v364 = vpop.f32.mrf.mxu0
  %v365 = vadd.f32 %v245, %v364
  %v366 = vpop.f32.mrf.mxu0
  %367 = vmatprep.mubr.bf16.mxu0 0
  %368 = vmatmul.mubr.bf16.gmra.mxu0 %v284
  %v369 = vpop.f32.mrf.mxu0
  %v370 = vadd.f32 %v245, %v369
  %v371 = vpop.f32.mrf.mxu0
  %v372 = vpop.f32.mrf.mxu0
  %v373 = vadd.f32 %v245, %v372
  %v374 = vpop.f32.mrf.mxu0
  %375 = vmatprep.mubr.bf16.mxu0 0
  %376 = vmatmul.mubr.bf16.gmra.mxu0 %v285
  %v377 = vpop.f32.mrf.mxu0
  %v378 = vadd.f32 %v245, %v377
  %v379 = vpop.f32.mrf.mxu0
  %v380 = vpop.f32.mrf.mxu0
  %v381 = vadd.f32 %v245, %v380
  %v382 = vpop.f32.mrf.mxu0
  %383 = vmatprep.mubr.bf16.mxu0 0
  %384 = vmatmul.mubr.bf16.gmra.mxu0 %v286
  %v385 = vpop.f32.mrf.mxu0
  %v386 = vadd.f32 %v245, %v385
  %v387 = vpop.f32.mrf.mxu0
  %v388 = vpop.f32.mrf.mxu0
  %v389 = vadd.f32 %v245, %v388
  %v390 = vpop.f32.mrf.mxu0
  %391 = vdwg.mxu0
  %v392 = vmax.f32 %v330, 0.0
  %v393 = vmax.f32 %v333, 0.0
  %v394 = vmax.f32 %v338, 0.0
  %v395 = vmax.f32 %v341, 0.0
  %v396 = vmax.f32 %v346, 0.0
  %v397 = vmax.f32 %v349, 0.0
  %v398 = vmax.f32 %v354, 0.0
  %v399 = vmax.f32 %v357, 0.0
  %v400 = vmax.f32 %v362, 0.0
  %v401 = vmax.f32 %v365, 0.0
  %v402 = vmax.f32 %v370, 0.0
  %v403 = vmax.f32 %v373, 0.0
  %v404 = vmax.f32 %v378, 0.0
  %v405 = vmax.f32 %v381, 0.0
  %v406 = vmax.f32 %v386, 0.0
  %v407 = vmax.f32 %v389, 0.0
  %v408 = vpack.c.bf16 %v393, %v392
  %v409 = vpack.c.bf16 %v395, %v394
  %v410 = vpack.c.bf16 %v397, %v396
  %v411 = vpack.c.bf16 %v399, %v398
  %v412 = vpack.c.bf16 %v401, %v400
  %v413 = vpack.c.bf16 %v403, %v402
  %v414 = vpack.c.bf16 %v405, %v404
  %v415 = vpack.c.bf16 %v407, %v406
  %v416 = vld [vmem:[%s4] sm:$0xf]
  %v417 = vld [vmem:[%s4 + $0x4] sm:$0xf]
  %v418 = vld [vmem:[%s4 + $0x8] sm:$0xf]
  %v419 = vld [vmem:[%s4 + $0xc] sm:$0xf]
  %v420 = vld [vmem:[%s4 + $0x10] sm:$0xf]
  %v421 = vld [vmem:[%s4 + $0x14] sm:$0xf]
  %v422 = vld [vmem:[%s4 + $0x18] sm:$0xf]
  %v423 = vld [vmem:[%s4 + $0x1c] sm:$0xf]
  %v424 = vld [vmem:[%s4 + $0x20] sm:$0xf]
  %v425 = vld [vmem:[%s4 + $0x24] sm:$0xf]
  %v426 = vld [vmem:[%s4 + $0x28] sm:$0xf]
  %v427 = vld [vmem:[%s4 + $0x2c] sm:$0xf]
  %v428 = vld [vmem:[%s4 + $0x30] sm:$0xf]
  %v429 = vld [vmem:[%s4 + $0x34] sm:$0xf]
  %v430 = vld [vmem:[%s4 + $0x38] sm:$0xf]
  %v431 = vld [vmem:[%s4 + $0x3c] sm:$0xf]
  %v448 = vunpack.c.l.b16 %v416
  %v449 = vunpack.c.l.b16 %v417
  %v450 = vunpack.c.l.b16 %v418
  %v451 = vunpack.c.l.b16 %v419
  %v452 = vunpack.c.l.b16 %v420
  %v453 = vunpack.c.l.b16 %v421
  %v454 = vunpack.c.l.b16 %v422
  %v455 = vunpack.c.l.b16 %v423
  %v456 = vunpack.c.l.b16 %v424
  %v457 = vunpack.c.l.b16 %v425
  %v458 = vunpack.c.l.b16 %v426
  %v459 = vunpack.c.l.b16 %v427
  %v460 = vunpack.c.l.b16 %v428
  %v461 = vunpack.c.l.b16 %v429
  %v462 = vunpack.c.l.b16 %v430
  %v463 = vunpack.c.l.b16 %v431
  %v464 = vpack.c.b16 %v449, %v448
  %v465 = vpack.c.b16 %v451, %v450
  %v466 = vpack.c.b16 %v453, %v452
  %v467 = vpack.c.b16 %v455, %v454
  %v468 = vpack.c.b16 %v457, %v456
  %v469 = vpack.c.b16 %v459, %v458
  %v470 = vpack.c.b16 %v461, %v460
  %v471 = vpack.c.b16 %v463, %v462
  %480 = vmatprep.subr.bf16.mxu0 0
  %481 = vmatpush1.bf16.msra.mxu0 %v471
  %482 = vmatprep.subr.bf16.mxu0 0
  %483 = vmatpush1.bf16.msra.mxu0 %v470
  %484 = vmatprep.subr.bf16.mxu0 0
  %485 = vmatpush1.bf16.msra.mxu0 %v469
  %486 = vmatprep.subr.bf16.mxu0 0
  %487 = vmatpush1.bf16.msra.mxu0 %v468
  %488 = vmatprep.subr.bf16.mxu0 0
  %489 = vmatpush1.bf16.msra.mxu0 %v467
  %490 = vmatprep.subr.bf16.mxu0 0
  %491 = vmatpush1.bf16.msra.mxu0 %v466
  %492 = vmatprep.subr.bf16.mxu0 0
  %493 = vmatpush1.bf16.msra.mxu0 %v465
  %494 = vmatprep.subr.bf16.mxu0 0
  %495 = vmatpush1.bf16.msra.mxu0 %v464
  %496 = vmatprep.subr.bf16.mxu0 0
  %497 = vmatpush2.bf16.msra.mxu0 0
  %498 = vmatprep.subr.bf16.mxu0 0
  %499 = vmatpush2.bf16.msra.mxu0 0
  %500 = vmatprep.subr.bf16.mxu0 0
  %501 = vmatpush2.bf16.msra.mxu0 0
  %502 = vmatprep.subr.bf16.mxu0 0
  %503 = vmatpush2.bf16.msra.mxu0 0
  %504 = vmatprep.subr.bf16.mxu0 0
  %505 = vmatpush2.bf16.msra.mxu0 0
  %506 = vmatprep.subr.bf16.mxu0 0
  %507 = vmatpush2.bf16.msra.mxu0 0
  %508 = vmatprep.subr.bf16.mxu0 0
  %509 = vmatpush2.bf16.msra.mxu0 0
  %510 = vmatprep.subr.bf16.mxu0 0
  %511 = vmatpush2.bf16.msra.mxu0 0
  %512 = vmatprep.mubr.bf16.mxu0 0
  %513 = vmatmul.mubr.bf16.gmra.mxu0 %v408
  %v514 = vpop.f32.mrf.mxu0
  %v515 = vadd.f32 0.0, %v514
  %v516 = vpop.f32.mrf.mxu0
  %v517 = vpop.f32.mrf.mxu0
  %v518 = vadd.f32 0.0, %v517
  %v519 = vpop.f32.mrf.mxu0
  %520 = vmatprep.mubr.bf16.mxu0 0
  %521 = vmatmul.mubr.bf16.gmra.mxu0 %v409
  %v522 = vpop.f32.mrf.mxu0
  %v523 = vadd.f32 0.0, %v522
  %v524 = vpop.f32.mrf.mxu0
  %v525 = vpop.f32.mrf.mxu0
  %v526 = vadd.f32 0.0, %v525
  %v527 = vpop.f32.mrf.mxu0
  %528 = vmatprep.mubr.bf16.mxu0 0
  %529 = vmatmul.mubr.bf16.gmra.mxu0 %v410
  %v530 = vpop.f32.mrf.mxu0
  %v531 = vadd.f32 0.0, %v530
  %v532 = vpop.f32.mrf.mxu0
  %v533 = vpop.f32.mrf.mxu0
  %v534 = vadd.f32 0.0, %v533
  %v535 = vpop.f32.mrf.mxu0
  %536 = vmatprep.mubr.bf16.mxu0 0
  %537 = vmatmul.mubr.bf16.gmra.mxu0 %v411
  %v538 = vpop.f32.mrf.mxu0
  %v539 = vadd.f32 0.0, %v538
  %v540 = vpop.f32.mrf.mxu0
  %v541 = vpop.f32.mrf.mxu0
  %v542 = vadd.f32 0.0, %v541
  %v543 = vpop.f32.mrf.mxu0
  %544 = vmatprep.mubr.bf16.mxu0 0
  %545 = vmatmul.mubr.bf16.gmra.mxu0 %v412
  %v546 = vpop.f32.mrf.mxu0
  %v547 = vadd.f32 0.0, %v546
  %v548 = vpop.f32.mrf.mxu0
  %v549 = vpop.f32.mrf.mxu0
  %v550 = vadd.f32 0.0, %v549
  %v551 = vpop.f32.mrf.mxu0
  %552 = vmatprep.mubr.bf16.mxu0 0
  %553 = vmatmul.mubr.bf16.gmra.mxu0 %v413
  %v554 = vpop.f32.mrf.mxu0
  %v555 = vadd.f32 0.0, %v554
  %v556 = vpop.f32.mrf.mxu0
  %v557 = vpop.f32.mrf.mxu0
  %v558 = vadd.f32 0.0, %v557
  %v559 = vpop.f32.mrf.mxu0
  %560 = vmatprep.mubr.bf16.mxu0 0
  %561 = vmatmul.mubr.bf16.gmra.mxu0 %v414
  %v562 = vpop.f32.mrf.mxu0
  %v563 = vadd.f32 0.0, %v562
  %v564 = vpop.f32.mrf.mxu0
  %v565 = vpop.f32.mrf.mxu0
  %v566 = vadd.f32 0.0, %v565
  %v567 = vpop.f32.mrf.mxu0
  %568 = vmatprep.mubr.bf16.mxu0 0
  %569 = vmatmul.mubr.bf16.gmra.mxu0 %v415
  %v570 = vpop.f32.mrf.mxu0
  %v571 = vadd.f32 0.0, %v570
  %v572 = vpop.f32.mrf.mxu0
  %v573 = vpop.f32.mrf.mxu0
  %v574 = vadd.f32 0.0, %v573
  %v575 = vpop.f32.mrf.mxu0
  %576 = vdwg.mxu0
  %v577 = vpack.c.bf16 %v518, %v515
  %v578 = vpack.c.bf16 %v526, %v523
  %v579 = vpack.c.bf16 %v534, %v531
  %v580 = vpack.c.bf16 %v542, %v539
  %v581 = vpack.c.bf16 %v550, %v547
  %v582 = vpack.c.bf16 %v558, %v555
  %v583 = vpack.c.bf16 %v566, %v563
  %v584 = vpack.c.bf16 %v574, %v571
  %v585 = vld [vmem:[%s5] sm:$0x1]
  %v587 = vlaneseq
  %v588 = vshrl.u32 %v587, 7
  %v589 = vsub.s32 0, %v588
  %v590 = vrot.slane %v585, %v589
  %592 = vmatprep.subr.bf16.mxu0 0
  %593 = vmatpush1.bf16.msra.mxu0 %v584
  %594 = vmatprep.subr.bf16.mxu0 0
  %595 = vmatpush1.bf16.msra.mxu0 %v583
  %596 = vmatprep.subr.bf16.mxu0 0
  %597 = vmatpush1.bf16.msra.mxu0 %v582
  %598 = vmatprep.subr.bf16.mxu0 0
  %599 = vmatpush1.bf16.msra.mxu0 %v581
  %600 = vmatprep.subr.bf16.mxu0 0
  %601 = vmatpush1.bf16.msra.mxu0 %v580
  %602 = vmatprep.subr.bf16.mxu0 0
  %603 = vmatpush1.bf16.msra.mxu0 %v579
  %604 = vmatprep.subr.bf16.mxu0 0
  %605 = vmatpush1.bf16.msra.mxu0 %v578
  %606 = vmatprep.subr.bf16.mxu0 0
  %607 = vmatpush1.bf16.msra.mxu0 %v577
  %608 = vmatprep.subr.bf16.mxu0 0
  %609 = vmatpush2.bf16.msra.mxu0 0
  %610 = vmatprep.subr.bf16.mxu0 0
  %611 = vmatpush2.bf16.msra.mxu0 0
  %612 = vmatprep.subr.bf16.mxu0 0
  %613 = vmatpush2.bf16.msra.mxu0 0
  %614 = vmatprep.subr.bf16.mxu0 0
  %615 = vmatpush2.bf16.msra.mxu0 0
  %616 = vmatprep.subr.bf16.mxu0 0
  %617 = vmatpush2.bf16.msra.mxu0 0
  %618 = vmatprep.subr.bf16.mxu0 0
  %619 = vmatpush2.bf16.msra.mxu0 0
  %620 = vmatprep.subr.bf16.mxu0 0
  %621 = vmatpush2.bf16.msra.mxu0 0
  %622 = vmatprep.subr.bf16.mxu0 0
  %623 = vmatpush2.bf16.msra.mxu0 0
  %624 = vmatprep.mubr.bf16.mxu0 0
  %625 = vmatmul.mubr.bf16.gmra.mxu0 %v279
  %v626 = vpop.f32.mrf.mxu0
  %v627 = vadd.f32 %v590, %v626
  %v628 = vpop.f32.mrf.mxu0
  %v629 = vpop.f32.mrf.mxu0
  %v630 = vadd.f32 %v590, %v629
  %v631 = vpop.f32.mrf.mxu0
  %632 = vmatprep.mubr.bf16.mxu0 0
  %633 = vmatmul.mubr.bf16.gmra.mxu0 %v280
  %v634 = vpop.f32.mrf.mxu0
  %v635 = vadd.f32 %v590, %v634
  %v636 = vpop.f32.mrf.mxu0
  %v637 = vpop.f32.mrf.mxu0
  %v638 = vadd.f32 %v590, %v637
  %v639 = vpop.f32.mrf.mxu0
  %640 = vmatprep.mubr.bf16.mxu0 0
  %641 = vmatmul.mubr.bf16.gmra.mxu0 %v281
  %v642 = vpop.f32.mrf.mxu0
  %v643 = vadd.f32 %v590, %v642
  %v644 = vpop.f32.mrf.mxu0
  %v645 = vpop.f32.mrf.mxu0
  %v646 = vadd.f32 %v590, %v645
  %v647 = vpop.f32.mrf.mxu0
  %648 = vmatprep.mubr.bf16.mxu0 0
  %649 = vmatmul.mubr.bf16.gmra.mxu0 %v282
  %v650 = vpop.f32.mrf.mxu0
  %v651 = vadd.f32 %v590, %v650
  %v652 = vpop.f32.mrf.mxu0
  %v653 = vpop.f32.mrf.mxu0
  %v654 = vadd.f32 %v590, %v653
  %v655 = vpop.f32.mrf.mxu0
  %656 = vmatprep.mubr.bf16.mxu0 0
  %657 = vmatmul.mubr.bf16.gmra.mxu0 %v283
  %v658 = vpop.f32.mrf.mxu0
  %v659 = vadd.f32 %v590, %v658
  %v660 = vpop.f32.mrf.mxu0
  %v661 = vpop.f32.mrf.mxu0
  %v662 = vadd.f32 %v590, %v661
  %v663 = vpop.f32.mrf.mxu0
  %664 = vmatprep.mubr.bf16.mxu0 0
  %665 = vmatmul.mubr.bf16.gmra.mxu0 %v284
  %v666 = vpop.f32.mrf.mxu0
  %v667 = vadd.f32 %v590, %v666
  %v668 = vpop.f32.mrf.mxu0
  %v669 = vpop.f32.mrf.mxu0
  %v670 = vadd.f32 %v590, %v669
  %v671 = vpop.f32.mrf.mxu0
  %672 = vmatprep.mubr.bf16.mxu0 0
  %673 = vmatmul.mubr.bf16.gmra.mxu0 %v285
  %v674 = vpop.f32.mrf.mxu0
  %v675 = vadd.f32 %v590, %v674
  %v676 = vpop.f32.mrf.mxu0
  %v677 = vpop.f32.mrf.mxu0
  %v678 = vadd.f32 %v590, %v677
  %v679 = vpop.f32.mrf.mxu0
  %680 = vmatprep.mubr.bf16.mxu0 0
  %681 = vmatmul.mubr.bf16.gmra.mxu0 %v286
  %v682 = vpop.f32.mrf.mxu0
  %v683 = vadd.f32 %v590, %v682
  %v684 = vpop.f32.mrf.mxu0
  %v685 = vpop.f32.mrf.mxu0
  %v686 = vadd.f32 %v590, %v685
  %v687 = vpop.f32.mrf.mxu0
  %688 = vdwg.mxu0
  %v689 = vmax.f32 %v627, 0.0
  %v690 = vmax.f32 %v630, 0.0
  %v691 = vmax.f32 %v635, 0.0
  %v692 = vmax.f32 %v638, 0.0
  %v693 = vmax.f32 %v643, 0.0
  %v694 = vmax.f32 %v646, 0.0
  %v695 = vmax.f32 %v651, 0.0
  %v696 = vmax.f32 %v654, 0.0
  %v697 = vmax.f32 %v659, 0.0
  %v698 = vmax.f32 %v662, 0.0
  %v699 = vmax.f32 %v667, 0.0
  %v700 = vmax.f32 %v670, 0.0
  %v701 = vmax.f32 %v675, 0.0
  %v702 = vmax.f32 %v678, 0.0
  %v703 = vmax.f32 %v683, 0.0
  %v704 = vmax.f32 %v686, 0.0
  %v705 = vpack.c.bf16 %v690, %v689
  %v706 = vpack.c.bf16 %v692, %v691
  %v707 = vpack.c.bf16 %v694, %v693
  %v708 = vpack.c.bf16 %v696, %v695
  %v709 = vpack.c.bf16 %v698, %v697
  %v710 = vpack.c.bf16 %v700, %v699
  %v711 = vpack.c.bf16 %v702, %v701
  %v712 = vpack.c.bf16 %v704, %v703
  %v713 = vld [vmem:[%s6] sm:$0xf]
  %v714 = vld [vmem:[%s6 + $0x4] sm:$0xf]
  %v715 = vld [vmem:[%s6 + $0x8] sm:$0xf]
  %v716 = vld [vmem:[%s6 + $0xc] sm:$0xf]
  %v717 = vld [vmem:[%s6 + $0x10] sm:$0xf]
  %v718 = vld [vmem:[%s6 + $0x14] sm:$0xf]
  %v719 = vld [vmem:[%s6 + $0x18] sm:$0xf]
  %v720 = vld [vmem:[%s6 + $0x1c] sm:$0xf]
  %v721 = vld [vmem:[%s6 + $0x20] sm:$0xf]
  %v722 = vld [vmem:[%s6 + $0x24] sm:$0xf]
  %v723 = vld [vmem:[%s6 + $0x28] sm:$0xf]
  %v724 = vld [vmem:[%s6 + $0x2c] sm:$0xf]
  %v725 = vld [vmem:[%s6 + $0x30] sm:$0xf]
  %v726 = vld [vmem:[%s6 + $0x34] sm:$0xf]
  %v727 = vld [vmem:[%s6 + $0x38] sm:$0xf]
  %v728 = vld [vmem:[%s6 + $0x3c] sm:$0xf]
  %v745 = vunpack.c.l.b16 %v713
  %v746 = vunpack.c.l.b16 %v714
  %v747 = vunpack.c.l.b16 %v715
  %v748 = vunpack.c.l.b16 %v716
  %v749 = vunpack.c.l.b16 %v717
  %v750 = vunpack.c.l.b16 %v718
  %v751 = vunpack.c.l.b16 %v719
  %v752 = vunpack.c.l.b16 %v720
  %v753 = vunpack.c.l.b16 %v721
  %v754 = vunpack.c.l.b16 %v722
  %v755 = vunpack.c.l.b16 %v723
  %v756 = vunpack.c.l.b16 %v724
  %v757 = vunpack.c.l.b16 %v725
  %v758 = vunpack.c.l.b16 %v726
  %v759 = vunpack.c.l.b16 %v727
  %v760 = vunpack.c.l.b16 %v728
  %v761 = vpack.c.b16 %v746, %v745
  %v762 = vpack.c.b16 %v748, %v747
  %v763 = vpack.c.b16 %v750, %v749
  %v764 = vpack.c.b16 %v752, %v751
  %v765 = vpack.c.b16 %v754, %v753
  %v766 = vpack.c.b16 %v756, %v755
  %v767 = vpack.c.b16 %v758, %v757
  %v768 = vpack.c.b16 %v760, %v759
  %777 = vmatprep.subr.bf16.mxu0 0
  %778 = vmatpush1.bf16.msra.mxu0 %v768
  %779 = vmatprep.subr.bf16.mxu0 0
  %780 = vmatpush1.bf16.msra.mxu0 %v767
  %781 = vmatprep.subr.bf16.mxu0 0
  %782 = vmatpush1.bf16.msra.mxu0 %v766
  %783 = vmatprep.subr.bf16.mxu0 0
  %784 = vmatpush1.bf16.msra.mxu0 %v765
  %785 = vmatprep.subr.bf16.mxu0 0
  %786 = vmatpush1.bf16.msra.mxu0 %v764
  %787 = vmatprep.subr.bf16.mxu0 0
  %788 = vmatpush1.bf16.msra.mxu0 %v763
  %789 = vmatprep.subr.bf16.mxu0 0
  %790 = vmatpush1.bf16.msra.mxu0 %v762
  %791 = vmatprep.subr.bf16.mxu0 0
  %792 = vmatpush1.bf16.msra.mxu0 %v761
  %793 = vmatprep.subr.bf16.mxu0 0
  %794 = vmatpush2.bf16.msra.mxu0 0
  %795 = vmatprep.subr.bf16.mxu0 0
  %796 = vmatpush2.bf16.msra.mxu0 0
  %797 = vmatprep.subr.bf16.mxu0 0
  %798 = vmatpush2.bf16.msra.mxu0 0
  %799 = vmatprep.subr.bf16.mxu0 0
  %800 = vmatpush2.bf16.msra.mxu0 0
  %801 = vmatprep.subr.bf16.mxu0 0
  %802 = vmatpush2.bf16.msra.mxu0 0
  %803 = vmatprep.subr.bf16.mxu0 0
  %804 = vmatpush2.bf16.msra.mxu0 0
  %805 = vmatprep.subr.bf16.mxu0 0
  %806 = vmatpush2.bf16.msra.mxu0 0
  %807 = vmatprep.subr.bf16.mxu0 0
  %808 = vmatpush2.bf16.msra.mxu0 0
  %809 = vmatprep.mubr.bf16.mxu0 0
  %810 = vmatmul.mubr.bf16.gmra.mxu0 %v705
  %v811 = vpop.f32.mrf.mxu0
  %v812 = vadd.f32 0.0, %v811
  %v813 = vpop.f32.mrf.mxu0
  %v814 = vpop.f32.mrf.mxu0
  %v815 = vadd.f32 0.0, %v814
  %v816 = vpop.f32.mrf.mxu0
  %817 = vmatprep.mubr.bf16.mxu0 0
  %818 = vmatmul.mubr.bf16.gmra.mxu0 %v706
  %v819 = vpop.f32.mrf.mxu0
  %v820 = vadd.f32 0.0, %v819
  %v821 = vpop.f32.mrf.mxu0
  %v822 = vpop.f32.mrf.mxu0
  %v823 = vadd.f32 0.0, %v822
  %v824 = vpop.f32.mrf.mxu0
  %825 = vmatprep.mubr.bf16.mxu0 0
  %826 = vmatmul.mubr.bf16.gmra.mxu0 %v707
  %v827 = vpop.f32.mrf.mxu0
  %v828 = vadd.f32 0.0, %v827
  %v829 = vpop.f32.mrf.mxu0
  %v830 = vpop.f32.mrf.mxu0
  %v831 = vadd.f32 0.0, %v830
  %v832 = vpop.f32.mrf.mxu0
  %833 = vmatprep.mubr.bf16.mxu0 0
  %834 = vmatmul.mubr.bf16.gmra.mxu0 %v708
  %v835 = vpop.f32.mrf.mxu0
  %v836 = vadd.f32 0.0, %v835
  %v837 = vpop.f32.mrf.mxu0
  %v838 = vpop.f32.mrf.mxu0
  %v839 = vadd.f32 0.0, %v838
  %v840 = vpop.f32.mrf.mxu0
  %841 = vmatprep.mubr.bf16.mxu0 0
  %842 = vmatmul.mubr.bf16.gmra.mxu0 %v709
  %v843 = vpop.f32.mrf.mxu0
  %v844 = vadd.f32 0.0, %v843
  %v845 = vpop.f32.mrf.mxu0
  %v846 = vpop.f32.mrf.mxu0
  %v847 = vadd.f32 0.0, %v846
  %v848 = vpop.f32.mrf.mxu0
  %849 = vmatprep.mubr.bf16.mxu0 0
  %850 = vmatmul.mubr.bf16.gmra.mxu0 %v710
  %v851 = vpop.f32.mrf.mxu0
  %v852 = vadd.f32 0.0, %v851
  %v853 = vpop.f32.mrf.mxu0
  %v854 = vpop.f32.mrf.mxu0
  %v855 = vadd.f32 0.0, %v854
  %v856 = vpop.f32.mrf.mxu0
  %857 = vmatprep.mubr.bf16.mxu0 0
  %858 = vmatmul.mubr.bf16.gmra.mxu0 %v711
  %v859 = vpop.f32.mrf.mxu0
  %v860 = vadd.f32 0.0, %v859
  %v861 = vpop.f32.mrf.mxu0
  %v862 = vpop.f32.mrf.mxu0
  %v863 = vadd.f32 0.0, %v862
  %v864 = vpop.f32.mrf.mxu0
  %865 = vmatprep.mubr.bf16.mxu0 0
  %866 = vmatmul.mubr.bf16.gmra.mxu0 %v712
  %v867 = vpop.f32.mrf.mxu0
  %v868 = vadd.f32 0.0, %v867
  %v869 = vpop.f32.mrf.mxu0
  %v870 = vpop.f32.mrf.mxu0
  %v871 = vadd.f32 0.0, %v870
  %v872 = vpop.f32.mrf.mxu0
  %873 = vdwg.mxu0
  %v874 = vpack.c.bf16 %v815, %v812
  %v875 = vpack.c.bf16 %v823, %v820
  %v876 = vpack.c.bf16 %v831, %v828
  %v877 = vpack.c.bf16 %v839, %v836
  %v878 = vpack.c.bf16 %v847, %v844
  %v879 = vpack.c.bf16 %v855, %v852
  %v880 = vpack.c.bf16 %v863, %v860
  %v881 = vpack.c.bf16 %v871, %v868
  %v882 = vld [vmem:[%s7] sm:$0x1]
  %v884 = vlaneseq
  %v885 = vshrl.u32 %v884, 7
  %v886 = vsub.s32 0, %v885
  %v887 = vrot.slane %v882, %v886
  %889 = vmatprep.subr.bf16.mxu0 0
  %890 = vmatpush1.bf16.msra.mxu0 %v881
  %891 = vmatprep.subr.bf16.mxu0 0
  %892 = vmatpush1.bf16.msra.mxu0 %v880
  %893 = vmatprep.subr.bf16.mxu0 0
  %894 = vmatpush1.bf16.msra.mxu0 %v879
  %895 = vmatprep.subr.bf16.mxu0 0
  %896 = vmatpush1.bf16.msra.mxu0 %v878
  %897 = vmatprep.subr.bf16.mxu0 0
  %898 = vmatpush1.bf16.msra.mxu0 %v877
  %899 = vmatprep.subr.bf16.mxu0 0
  %900 = vmatpush1.bf16.msra.mxu0 %v876
  %901 = vmatprep.subr.bf16.mxu0 0
  %902 = vmatpush1.bf16.msra.mxu0 %v875
  %903 = vmatprep.subr.bf16.mxu0 0
  %904 = vmatpush1.bf16.msra.mxu0 %v874
  %905 = vmatprep.subr.bf16.mxu0 0
  %906 = vmatpush2.bf16.msra.mxu0 0
  %907 = vmatprep.subr.bf16.mxu0 0
  %908 = vmatpush2.bf16.msra.mxu0 0
  %909 = vmatprep.subr.bf16.mxu0 0
  %910 = vmatpush2.bf16.msra.mxu0 0
  %911 = vmatprep.subr.bf16.mxu0 0
  %912 = vmatpush2.bf16.msra.mxu0 0
  %913 = vmatprep.subr.bf16.mxu0 0
  %914 = vmatpush2.bf16.msra.mxu0 0
  %915 = vmatprep.subr.bf16.mxu0 0
  %916 = vmatpush2.bf16.msra.mxu0 0
  %917 = vmatprep.subr.bf16.mxu0 0
  %918 = vmatpush2.bf16.msra.mxu0 0
  %919 = vmatprep.subr.bf16.mxu0 0
  %920 = vmatpush2.bf16.msra.mxu0 0
  %921 = vmatprep.mubr.bf16.mxu0 0
  %922 = vmatmul.mubr.bf16.gmra.mxu0 %v279
  %v923 = vpop.f32.mrf.mxu0
  %v924 = vadd.f32 %v887, %v923
  %v925 = vpop.f32.mrf.mxu0
  %v926 = vpop.f32.mrf.mxu0
  %v927 = vadd.f32 %v887, %v926
  %v928 = vpop.f32.mrf.mxu0
  %929 = vmatprep.mubr.bf16.mxu0 0
  %930 = vmatmul.mubr.bf16.gmra.mxu0 %v280
  %v931 = vpop.f32.mrf.mxu0
  %v932 = vadd.f32 %v887, %v931
  %v933 = vpop.f32.mrf.mxu0
  %v934 = vpop.f32.mrf.mxu0
  %v935 = vadd.f32 %v887, %v934
  %v936 = vpop.f32.mrf.mxu0
  %937 = vmatprep.mubr.bf16.mxu0 0
  %938 = vmatmul.mubr.bf16.gmra.mxu0 %v281
  %v939 = vpop.f32.mrf.mxu0
  %v940 = vadd.f32 %v887, %v939
  %v941 = vpop.f32.mrf.mxu0
  %v942 = vpop.f32.mrf.mxu0
  %v943 = vadd.f32 %v887, %v942
  %v944 = vpop.f32.mrf.mxu0
  %945 = vmatprep.mubr.bf16.mxu0 0
  %946 = vmatmul.mubr.bf16.gmra.mxu0 %v282
  %v947 = vpop.f32.mrf.mxu0
  %v948 = vadd.f32 %v887, %v947
  %v949 = vpop.f32.mrf.mxu0
  %v950 = vpop.f32.mrf.mxu0
  %v951 = vadd.f32 %v887, %v950
  %v952 = vpop.f32.mrf.mxu0
  %953 = vmatprep.mubr.bf16.mxu0 0
  %954 = vmatmul.mubr.bf16.gmra.mxu0 %v283
  %v955 = vpop.f32.mrf.mxu0
  %v956 = vadd.f32 %v887, %v955
  %v957 = vpop.f32.mrf.mxu0
  %v958 = vpop.f32.mrf.mxu0
  %v959 = vadd.f32 %v887, %v958
  %v960 = vpop.f32.mrf.mxu0
  %961 = vmatprep.mubr.bf16.mxu0 0
  %962 = vmatmul.mubr.bf16.gmra.mxu0 %v284
  %v963 = vpop.f32.mrf.mxu0
  %v964 = vadd.f32 %v887, %v963
  %v965 = vpop.f32.mrf.mxu0
  %v966 = vpop.f32.mrf.mxu0
  %v967 = vadd.f32 %v887, %v966
  %v968 = vpop.f32.mrf.mxu0
  %969 = vmatprep.mubr.bf16.mxu0 0
  %970 = vmatmul.mubr.bf16.gmra.mxu0 %v285
  %v971 = vpop.f32.mrf.mxu0
  %v972 = vadd.f32 %v887, %v971
  %v973 = vpop.f32.mrf.mxu0
  %v974 = vpop.f32.mrf.mxu0
  %v975 = vadd.f32 %v887, %v974
  %v976 = vpop.f32.mrf.mxu0
  %977 = vmatprep.mubr.bf16.mxu0 0
  %978 = vmatmul.mubr.bf16.gmra.mxu0 %v286
  %v979 = vpop.f32.mrf.mxu0
  %v980 = vadd.f32 %v887, %v979
  %v981 = vpop.f32.mrf.mxu0
  %v982 = vpop.f32.mrf.mxu0
  %v983 = vadd.f32 %v887, %v982
  %v984 = vpop.f32.mrf.mxu0
  %985 = vdwg.mxu0
  %v986 = vpack.c.bf16 %v927, %v924
  %v987 = vpack.c.bf16 %v935, %v932
  %v988 = vpack.c.bf16 %v943, %v940
  %v989 = vpack.c.bf16 %v951, %v948
  %v990 = vpack.c.bf16 %v959, %v956
  %v991 = vpack.c.bf16 %v967, %v964
  %v992 = vpack.c.bf16 %v975, %v972
  %v993 = vpack.c.bf16 %v983, %v980
  %v1002 = vunpack.c.l.b16 %v986
  %v1003 = vunpack.c.h.b16 %v986
  %v1004 = vunpack.c.l.b16 %v987
  %v1005 = vunpack.c.h.b16 %v987
  %v1006 = vunpack.c.l.b16 %v988
  %v1007 = vunpack.c.h.b16 %v988
  %v1008 = vunpack.c.l.b16 %v989
  %v1009 = vunpack.c.h.b16 %v989
  %v1010 = vunpack.c.l.b16 %v990
  %v1011 = vunpack.c.h.b16 %v990
  %v1012 = vunpack.c.l.b16 %v991
  %v1013 = vunpack.c.h.b16 %v991
  %v1014 = vunpack.c.l.b16 %v992
  %v1015 = vunpack.c.h.b16 %v992
  %v1016 = vunpack.c.l.b16 %v993
  %v1017 = vunpack.c.h.b16 %v993
  %v1018 = vpack.c.b16 %v1002, %v1002
  %v1019 = vpack.c.b16 %v1003, %v1003
  %v1020 = vpack.c.b16 %v1004, %v1004
  %v1021 = vpack.c.b16 %v1005, %v1005
  %v1022 = vpack.c.b16 %v1006, %v1006
  %v1023 = vpack.c.b16 %v1007, %v1007
  %v1024 = vpack.c.b16 %v1008, %v1008
  %v1025 = vpack.c.b16 %v1009, %v1009
  %v1026 = vpack.c.b16 %v1010, %v1010
  %v1027 = vpack.c.b16 %v1011, %v1011
  %v1028 = vpack.c.b16 %v1012, %v1012
  %v1029 = vpack.c.b16 %v1013, %v1013
  %v1030 = vpack.c.b16 %v1014, %v1014
  %v1031 = vpack.c.b16 %v1015, %v1015
  %v1032 = vpack.c.b16 %v1016, %v1016
  %v1033 = vpack.c.b16 %v1017, %v1017
  %1050 = vst [vmem:[%s8] sm:$0xf] %v1018
  %1051 = vst [vmem:[%s8 + $0x4] sm:$0xf] %v1019
  %1052 = vst [vmem:[%s8 + $0x8] sm:$0xf] %v1020
  %1053 = vst [vmem:[%s8 + $0xc] sm:$0xf] %v1021
  %1054 = vst [vmem:[%s8 + $0x10] sm:$0xf] %v1022
  %1055 = vst [vmem:[%s8 + $0x14] sm:$0xf] %v1023
  %1056 = vst [vmem:[%s8 + $0x18] sm:$0xf] %v1024
  %1057 = vst [vmem:[%s8 + $0x1c] sm:$0xf] %v1025
  %1058 = vst [vmem:[%s8 + $0x20] sm:$0xf] %v1026
  %1059 = vst [vmem:[%s8 + $0x24] sm:$0xf] %v1027
  %1060 = vst [vmem:[%s8 + $0x28] sm:$0xf] %v1028
  %1061 = vst [vmem:[%s8 + $0x2c] sm:$0xf] %v1029
  %1062 = vst [vmem:[%s8 + $0x30] sm:$0xf] %v1030
  %1063 = vst [vmem:[%s8 + $0x34] sm:$0xf] %v1031
  %1064 = vst [vmem:[%s8 + $0x38] sm:$0xf] %v1032
  %1065 = vst [vmem:[%s8 + $0x3c] sm:$0xf] %v1033
  // Predicated region
  $region34: #{gcn3_forward.1} parent=0 // pred_check
    _
  $region35: #{gcn3_forward.1} parent=0 // pred_check_branch
    %1067 = sbr.rel (0) target = $region37
  $region36: #{gcn3_forward.1} parent=0 // pred_region
    _
  $region37: #{gcn3_forward.1} parent=0 // pred_fallthru
    _
  // Predicated region
  $region38: #{gcn3_forward.1} parent=0 // pred_check
    _
  $region39: #{gcn3_forward.1} parent=0 // pred_check_branch
    %1069 = sbr.rel (0) target = $region41
  $region40: #{gcn3_forward.1} parent=0 // pred_region
    _
  $region41: #{gcn3_forward.1} parent=0 // pred_fallthru
    _

</llo_original>
